<compile_context>
chip_gen: v7x
topology: tpu7x:2x2x1
jax: 0.10.0
libtpu: 0.0.40
codegen_flags: <defaults>
</compile_context>

<pallas_src>
import functools

import jax
import jax.numpy as jnp
import numpy as np
from jax import lax
from jax.experimental import pallas as pl
from jax.experimental.pallas import tpu as pltpu


# ----------------------------- phase 1: streaming statistics ----------------------------- #
def _stats_kernel(x_ref, psum_ref, pxxt_ref, *, hw_total, mask_needed):
    """Accumulate sum(x) and x @ x^T for one batch element across HW tiles."""
    j = pl.program_id(1)

    @pl.when(j == 0)
    def _init():
        psum_ref[...] = jnp.zeros_like(psum_ref)
        pxxt_ref[...] = jnp.zeros_like(pxxt_ref)

    x = x_ref[...]                                                  # (C, t_hw), native dtype
    if mask_needed:
        # Last HW tile may extend past the array; zero padded lanes so they contribute
        # nothing to either accumulator (jnp.where guards against NaN/Inf garbage too).
        t_hw = x.shape[-1]
        lane = lax.broadcasted_iota(jnp.int32, x.shape, 1)
        valid = (j * t_hw + lane) < hw_total
        x = jnp.where(valid, x, jnp.zeros_like(x))

    # Per-channel sum on the MXU (x @ ones column): avoids a full-tile f32 upcast on the
    # VPU and a cross-lane XLU reduction every step; the MXU has huge slack here.
    ones_col = jnp.ones((x.shape[-1], 1), dtype=x.dtype)
    psum_ref[...] += jnp.dot(x, ones_col, preferred_element_type=jnp.float32)

    # x @ x^T via dot_general contracting the lane axis of BOTH operands: the transpose is
    # absorbed in the MXU weight-load path, no (C, t_hw) XLU transpose is materialized.
    pxxt_ref[...] += lax.dot_general(
        x, x, (((1,), (1,)), ((), ())), preferred_element_type=jnp.float32)


# --------------------- finalize: Newton-Schulz + affine folding (plain XLA) --------------------- #
@functools.partial(jax.jit, static_argnames=("T", "eps", "momentum", "m_total"))
def _finalize(psum, pxxt, w, b, rm, rwm, *, T, eps, momentum, m_total):
    """Tiny (C,C) math: combine partials, whiten, fold affine, update running buffers."""
    total_sum = jnp.sum(psum, axis=0)                               # (C, 1)
    total_xxt = jnp.sum(pxxt, axis=0)                               # (C, C)
    C = total_sum.shape[0]
    inv_m = 1.0 / m_total
    mean = total_sum * inv_m
    eye = jnp.eye(C, dtype=jnp.float32)

    # Uncentered covariance form: Sigma = eps*I + E[xx^T] - mean mean^T.
    # TODO(synk): for strongly shifted activations (|mean| >> std) the centered xc@xc^T/M
    # form of the reference is numerically tighter; f32 accumulation keeps this within
    # ~1e-5 for typical inputs.
    Sigma = eps * eye + total_xxt * inv_m - mean @ mean.T
    rTr = 1.0 / jnp.trace(Sigma)
    Sigma_N = Sigma * rTr

    # Newton-Schulz: P_{k+1} = 1.5 P_k - 0.5 P_k^3 Sigma_N    (all f32, tiny problem)
    P = eye
    for _ in range(T):
        P = 1.5 * P - 0.5 * (P @ P @ P) @ Sigma_N
    wm = P * jnp.sqrt(rTr)                                          # whitening matrix (C, C)

    # Fold affine weight into wm (row scaling) and mean/bias into one per-channel offset so
    # the apply pass is a single matmul + add.
    wmw = wm * w                                                    # (C, C)
    b2 = b - wmw @ mean                                             # (C, 1)

    new_rm = momentum * mean + (1.0 - momentum) * rm
    new_rwm = momentum * wm + (1.0 - momentum) * rwm
    return wmw, b2, new_rm, new_rwm


# ----------------------------- phase 2: whitening + affine apply ----------------------------- #
def _apply_kernel(x_ref, wmw_ref, b2_ref, o_ref):
    # wmw is already pre-cast to X.dtype in the wrapper (no per-step (C,C) cast here).
    xn = jnp.dot(wmw_ref[...], x_ref[...], preferred_element_type=jnp.float32)
    o_ref[...] = (xn + b2_ref[...]).astype(o_ref.dtype)


# ----------------------------------------- wrapper ----------------------------------------- #
def _vmem_capacity_bytes():
    """Generation-aware VMEM capacity; conservative 64 MiB (v7x) fallback."""
    try:
        cap = getattr(pltpu.get_tpu_info(), "vmem_capacity_bytes", None)
        if cap:
            return int(cap)
    except Exception:
        pass
    return 64 * 2**20


def _choose_hw_tile(hw, c, itemsize, max_tile_bytes):
    """Lane-dense HW tile width: full HW, or a multiple of 128 within the byte budget
    (preferring exact divisors of HW so no boundary masking is needed)."""
    row_bytes = max(1, c * itemsize)
    if hw * row_bytes <= max_tile_bytes or hw <= 256:
        return hw                                                   # single full-width tile
    max_lanes = max(128, (max_tile_bytes // row_bytes) // 128 * 128)
    if hw >= 128:
        max_lanes = min(max_lanes, max(128, (hw // 128) * 128))
    for t in range(max_lanes, 127, -128):                          # prefer exact divisor
        if hw % t == 0:
            return t
    return max_lanes                                                # masked boundary tile


def _vmem_limit(tile_bytes, buffers, vmem_cap):
    need = buffers * tile_bytes + (4 << 20)
    return int(min(max(need, 32 << 20), (vmem_cap * 3) // 4))


def iternorm_forward(X, weight, bias, running_mean, running_wm,
                     *, T=5, eps=1e-5, momentum=0.1):
    """IterNorm forward (training mode, num_groups=1) with fused affine. X is NCHW."""
    N, C, H, W = X.shape
    HW = H * W
    M = N * HW

    # Free views only — no wrapper-side transposes (X streams twice, is written once).
    x = X.reshape(N, C, HW)
    rm = running_mean.reshape(C, 1).astype(jnp.float32)
    rwm = running_wm.astype(jnp.float32)
    w = weight.reshape(C, 1).astype(jnp.float32)
    b = bias.reshape(C, 1).astype(jnp.float32)

    itemsize = jnp.dtype(X.dtype).itemsize
    vmem_cap = _vmem_capacity_bytes()
    # Stats pass only double-buffers the input; apply pass double-buffers input + output.
    stats_tile_target = min(16 << 20, vmem_cap // 8)                # 16 MiB v5e/v6e, 8 MiB v7x
    apply_tile_target = min(8 << 20, vmem_cap // 16)                # 8 MiB v5e/v6e, 4 MiB v7x

    # ---------------- phase 1: per-batch partial sum / xx^T (parallel over N) ---------------- #
    t_hw_s = _choose_hw_tile(HW, C, itemsize, stats_tile_target)
    grid_s = (N, pl.cdiv(HW, t_hw_s))
    mask_s = (HW % t_hw_s) != 0

    x_spec_s = pl.BlockSpec((None, C, t_hw_s), lambda n, j: (n, 0, j))
    psum_spec = pl.BlockSpec((None, C, 1), lambda n, j: (n, 0, 0))
    pxxt_spec = pl.BlockSpec((None, C, C), lambda n, j: (n, 0, 0))

    psum, pxxt = pl.pallas_call(
        functools.partial(_stats_kernel, hw_total=HW, mask_needed=mask_s),
        out_shape=(jax.ShapeDtypeStruct((N, C, 1), jnp.float32),
                   jax.ShapeDtypeStruct((N, C, C), jnp.float32)),
        grid_spec=pltpu.PrefetchScalarGridSpec(
            num_scalar_prefetch=0,
            grid=grid_s,
            in_specs=[x_spec_s],
            out_specs=(psum_spec, pxxt_spec)),
        compiler_params=pltpu.CompilerParams(
            dimension_semantics=("parallel", "arbitrary"),
            vmem_limit_bytes=_vmem_limit(C * t_hw_s * itemsize, 3, vmem_cap)),
    )(x)

    # ---------------- finalize: tiny (C,C) Newton-Schulz + folding in plain XLA ---------------- #
    wmw, b2, new_rm, new_rwm = _finalize(
        psum, pxxt, w, b, rm, rwm, T=T, eps=eps, momentum=momentum, m_total=float(M))
    wmw_cast = wmw.astype(X.dtype)                                  # one-time cast, hoisted

    # ---------------- phase 2: o = wmw @ x + b2 (fully parallel) ---------------- #
    t_hw_a = _choose_hw_tile(HW, C, itemsize, apply_tile_target)
    grid_a = (N, pl.cdiv(HW, t_hw_a))

    x_spec_a = pl.BlockSpec((None, C, t_hw_a), lambda n, j: (n, 0, j))
    cc_spec = pl.BlockSpec((C, C), lambda n, j: (0, 0))
    c1_spec = pl.BlockSpec((C, 1), lambda n, j: (0, 0))

    out = pl.pallas_call(
        _apply_kernel,
        out_shape=jax.ShapeDtypeStruct((N, C, HW), X.dtype),
        grid_spec=pltpu.PrefetchScalarGridSpec(
            num_scalar_prefetch=0,
            grid=grid_a,
            in_specs=[x_spec_a, cc_spec, c1_spec],
            out_specs=x_spec_a),
        compiler_params=pltpu.CompilerParams(
            dimension_semantics=("parallel", "parallel"),
            vmem_limit_bytes=_vmem_limit(C * t_hw_a * itemsize, 5, vmem_cap)),
    )(x, wmw_cast, b2)

    return out.reshape(N, C, H, W), new_rm, new_rwm


# ----------------------------------- pure-JAX reference ----------------------------------- #
def _iternorm_reference(X, weight, bias, running_mean, running_wm,
                        *, T=5, eps=1e-5, momentum=0.1):
    """Mirrors the PyTorch training-path math exactly (centered covariance form)."""
    N, C, H, W = X.shape
    M = N * H * W
    x = jnp.transpose(X, (1, 0, 2, 3)).reshape(C, M).astype(jnp.float32)
    mean = jnp.mean(x, axis=-1, keepdims=True)
    xc = x - mean
    eye = jnp.eye(C, dtype=jnp.float32)
    Sigma = eps * eye + xc @ xc.T / M
    rTr = 1.0 / jnp.sum(Sigma * eye)
    Sigma_N = Sigma * rTr
    P = eye
    for _ in range(T):
        P = 1.5 * P - 0.5 * (P @ P @ P) @ Sigma_N
    wm = P * jnp.sqrt(rTr)
    xn = wm @ xc
    Xn = jnp.transpose(xn.reshape(C, N, H, W), (1, 0, 2, 3))
    out = Xn * weight.reshape(1, C, 1, 1) + bias.reshape(1, C, 1, 1)
    new_rm = momentum * mean + (1.0 - momentum) * running_mean.reshape(C, 1)
    new_rwm = momentum * wm + (1.0 - momentum) * running_wm
    return out, new_rm, new_rwm


if __name__ == "__main__":
    # Small NCHW shapes consistent with the 4-D module: batch=2, channels=8, spatial=16.
    N, C, H, W = 2, 8, 16, 16
    T, eps, momentum = 5, 1e-5, 0.1

    key = jax.random.PRNGKey(0)
    X = jax.random.normal(key, (N, C, H, W), dtype=jnp.float32)

    # Parameter / buffer init matching IterNorm.__init__ / reset_parameters:
    weight = jnp.ones((1, C, 1, 1), dtype=jnp.float32)
    bias = jnp.zeros((1, C, 1, 1), dtype=jnp.float32)
    running_mean = jnp.zeros((C, 1), dtype=jnp.float32)
    running_wm = jnp.eye(C, dtype=jnp.float32)

    out, new_rm, new_rwm = iternorm_forward(
        X, weight, bias, running_mean, running_wm, T=T, eps=eps, momentum=momentum)
    out, new_rm, new_rwm = jax.block_until_ready((out, new_rm, new_rwm))

    ref_out, ref_rm, ref_rwm = _iternorm_reference(
        X, weight, bias, running_mean, running_wm, T=T, eps=eps, momentum=momentum)

    np.testing.assert_allclose(np.asarray(out), np.asarray(ref_out), rtol=1e-4, atol=1e-4)
    np.testing.assert_allclose(np.asarray(new_rm), np.asarray(ref_rm), rtol=1e-4, atol=1e-4)
    np.testing.assert_allclose(np.asarray(new_rwm), np.asarray(ref_rwm), rtol=1e-4, atol=1e-4)

    print("KERNEL_OK")
</pallas_src>

<mosaic_0001>
module attributes {stable_mosaic.version = 11 : i64} {
  func.func @_stats_kernel(%arg0: i32, %arg1: i32, %arg2: memref<1x8x256xf32, #tpu.memory_space<vmem>>, %arg3: memref<1x8x1xf32, #tpu.memory_space<vmem>>, %arg4: memref<1x8x8xf32, #tpu.memory_space<vmem>>) attributes {dimension_semantics = [#tpu.dimension_semantics<parallel>, #tpu.dimension_semantics<arbitrary>], iteration_bounds = array<i64: 2, 1>, scalar_prefetch = 0 : i64, scratch_operands = 0 : i64, tpu.core_type = #tpu.core_type<tc>, window_params = [{transform_indices = @transform_0, window_bounds = array<i64: 1, 8, 256>}, {transform_indices = @transform_1, window_bounds = array<i64: 1, 8, 1>}, {transform_indices = @transform_2, window_bounds = array<i64: 1, 8, 8>}]} {
    %c0_i32 = arith.constant 0 : i32
    %0 = arith.cmpi eq, %arg1, %c0_i32 : i32
    %1 = arith.extui %0 : i1 to i32
    %c0_i32_0 = arith.constant 0 : i32
    %2 = arith.cmpi ne, %1, %c0_i32_0 : i32
    scf.if %2 {
      %cst_17 = arith.constant 0.000000e+00 : f32
      %20 = vector.broadcast %cst_17 : f32 to vector<8x1xf32>
      %c0_18 = arith.constant 0 : index
      %c0_19 = arith.constant 0 : index
      %c0_20 = arith.constant 0 : index
      %21 = vector.load %arg3[%c0_18, %c0_19, %c0_20] : memref<1x8x1xf32, #tpu.memory_space<vmem>>, vector<1x8x1xf32>
      %22 = vector.shape_cast %21 : vector<1x8x1xf32> to vector<8x1xf32>
      %23 = vector.shape_cast %20 : vector<8x1xf32> to vector<1x8x1xf32>
      tpu.vector_store %arg3[%c0_18, %c0_19, %c0_20], %23 {strides = array<i32>} : memref<1x8x1xf32, #tpu.memory_space<vmem>>, vector<1x8x1xf32>,
      %cst_21 = arith.constant 0.000000e+00 : f32
      %24 = vector.broadcast %cst_21 : f32 to vector<8x8xf32>
      %c0_22 = arith.constant 0 : index
      %c0_23 = arith.constant 0 : index
      %c0_24 = arith.constant 0 : index
      %25 = vector.load %arg4[%c0_22, %c0_23, %c0_24] : memref<1x8x8xf32, #tpu.memory_space<vmem>>, vector<1x8x8xf32>
      %26 = vector.shape_cast %25 : vector<1x8x8xf32> to vector<8x8xf32>
      %27 = vector.shape_cast %24 : vector<8x8xf32> to vector<1x8x8xf32>
      tpu.vector_store %arg4[%c0_22, %c0_23, %c0_24], %27 {strides = array<i32>} : memref<1x8x8xf32, #tpu.memory_space<vmem>>, vector<1x8x8xf32>,
    } else {
    }
    %c0 = arith.constant 0 : index
    %c0_1 = arith.constant 0 : index
    %c0_2 = arith.constant 0 : index
    %3 = vector.load %arg2[%c0, %c0_1, %c0_2] : memref<1x8x256xf32, #tpu.memory_space<vmem>>, vector<1x8x256xf32>
    %4 = vector.shape_cast %3 : vector<1x8x256xf32> to vector<8x256xf32>
    %cst = arith.constant 1.000000e+00 : f32
    %5 = vector.broadcast %cst : f32 to vector<256x1xf32>
    %c0_3 = arith.constant 0 : index
    %c0_4 = arith.constant 0 : index
    %c0_5 = arith.constant 0 : index
    %6 = vector.load %arg3[%c0_3, %c0_4, %c0_5] : memref<1x8x1xf32, #tpu.memory_space<vmem>>, vector<1x8x1xf32>
    %7 = vector.shape_cast %6 : vector<1x8x1xf32> to vector<8x1xf32>
    %cst_6 = arith.constant dense<0.000000e+00> : vector<8x1xf32>
    %8 = tpu.matmul %4, %5, %cst_6 {dimension_numbers = #tpu.dot_dimension_numbers<[1], [0], [0], [1], [0, 0, 1, 1], [], []>} : vector<8x256xf32>, vector<256x1xf32>, vector<8x1xf32> -> vector<8x1xf32>
    %9 = arith.addf %7, %8 : vector<8x1xf32>
    %c0_7 = arith.constant 0 : index
    %c0_8 = arith.constant 0 : index
    %c0_9 = arith.constant 0 : index
    %10 = vector.load %arg3[%c0_7, %c0_8, %c0_9] : memref<1x8x1xf32, #tpu.memory_space<vmem>>, vector<1x8x1xf32>
    %11 = vector.shape_cast %10 : vector<1x8x1xf32> to vector<8x1xf32>
    %12 = vector.shape_cast %9 : vector<8x1xf32> to vector<1x8x1xf32>
    tpu.vector_store %arg3[%c0_7, %c0_8, %c0_9], %12 {strides = array<i32>} : memref<1x8x1xf32, #tpu.memory_space<vmem>>, vector<1x8x1xf32>,
    %c0_10 = arith.constant 0 : index
    %c0_11 = arith.constant 0 : index
    %c0_12 = arith.constant 0 : index
    %13 = vector.load %arg4[%c0_10, %c0_11, %c0_12] : memref<1x8x8xf32, #tpu.memory_space<vmem>>, vector<1x8x8xf32>
    %14 = vector.shape_cast %13 : vector<1x8x8xf32> to vector<8x8xf32>
    %cst_13 = arith.constant dense<0.000000e+00> : vector<8x8xf32>
    %15 = tpu.matmul %4, %4, %cst_13 {dimension_numbers = #tpu.dot_dimension_numbers<[1], [1], [0], [0], [0, 0, 1, 0], [], []>} : vector<8x256xf32>, vector<8x256xf32>, vector<8x8xf32> -> vector<8x8xf32>
    %16 = arith.addf %14, %15 : vector<8x8xf32>
    %c0_14 = arith.constant 0 : index
    %c0_15 = arith.constant 0 : index
    %c0_16 = arith.constant 0 : index
    %17 = vector.load %arg4[%c0_14, %c0_15, %c0_16] : memref<1x8x8xf32, #tpu.memory_space<vmem>>, vector<1x8x8xf32>
    %18 = vector.shape_cast %17 : vector<1x8x8xf32> to vector<8x8xf32>
    %19 = vector.shape_cast %16 : vector<8x8xf32> to vector<1x8x8xf32>
    tpu.vector_store %arg4[%c0_14, %c0_15, %c0_16], %19 {strides = array<i32>} : memref<1x8x8xf32, #tpu.memory_space<vmem>>, vector<1x8x8xf32>,
    return
  }
  func.func @transform_0(%arg0: i32, %arg1: i32) -> (i32, i32, i32) {
    %c0_i32 = arith.constant 0 : i32
    %c0_i32_0 = arith.constant 0 : i32
    return %arg0, %c0_i32, %arg1 : i32, i32, i32
  }
  func.func @transform_1(%arg0: i32, %arg1: i32) -> (i32, i32, i32) {
    %c0_i32 = arith.constant 0 : i32
    %c0_i32_0 = arith.constant 0 : i32
    %c0_i32_1 = arith.constant 0 : i32
    return %arg0, %c0_i32, %c0_i32_0 : i32, i32, i32
  }
  func.func @transform_2(%arg0: i32, %arg1: i32) -> (i32, i32, i32) {
    %c0_i32 = arith.constant 0 : i32
    %c0_i32_0 = arith.constant 0 : i32
    %c0_i32_1 = arith.constant 0 : i32
    return %arg0, %c0_i32, %c0_i32_0 : i32, i32, i32
  }
}

</mosaic_0001>

<llo_original>
// kernel: tpu_custom_call.1
$region0: #{tpu_custom_call.1}
  #allocation0 [shape = 'u32[]', space=smem, size = 0x4, offset = 0x4, fixed_abs, tag = 'smem constant byte address 0x4 - core index']
  #allocation1 [shape = 'u32[144,128]{1,0:T(1,128)}', space=vmem, size = 0x12000, scoped, tag = 'internal scratch']
  %s0 = inlined_call_operand.hbm [shape: f32[2,8,256], index: 0, kind: input, shape index: {}]
  %s1 = inlined_call_operand.vmem [shape: f32[2,8,1], index: 1, kind: output, shape index: {0}]
  %s2 = inlined_call_operand.hbm [shape: f32[2,8,8], index: 2, kind: output, shape index: {1}]
  %3 = xla_tuple %s1, %s2
  %s4 = sld [smem:[#allocation0]]
  $region53: #{tpu_custom_call.1} parent=0
    _
  %s6 = ssub.s32 1, %s4
  %s7 = scalar_select 0, %s6, %s4
  $region1: #{tpu_custom_call.1} parent=0
    #allocation2 [shape = 'u8[16384]{0}', space=vmem, size = 0x4000, scoped, tag = 'input window, operand 0']
    #allocation3 [shape = 's32[2]{0}', space=sflag, size = 0x8, scoped, tag = 'scoped memory for tpu_custom_call.1']
    #allocation4 [shape = 's32[2]{0}', space=sflag, size = 0x8, scoped, tag = 'scoped memory for tpu_custom_call.1']
    #allocation5 [shape = 'u8[8192]{0}', space=vmem, size = 0x2000, scoped, tag = 'output window, operand 1']
    %8 = vsyncpa [#allocation3], 0
    %s9 = scalar_lea.sflag [#allocation3], 1
    %10 = vsyncpa %s9, 0
    %11 = vsyncpa [#allocation4], 0
    %s12 = scalar_lea.sflag [#allocation4], 1
    %13 = vsyncpa %s12, 0
    loop: start=0, step=1, limit=4
    $region2: #{tpu_custom_call.1} parent=1 // loop_pre_header
      _
    $region3: #{tpu_custom_call.1} parent=1 // loop_header
      %s15 = sphi 0, %s19
      %p16 = scmp.ge.s32.totalorder %s15, 4
      %s22 = sphi 0, %s34
      %s23 = sphi 0, %s30
      %s24 = sphi 0, %s22
      %s25 = sphi 0, %s23
      %s26 = sphi 0, %s24
      %s27 = sphi 0, %s25
      %s39 = sphi 0, %s41
      %s42 = sphi 0, %s39
      %s43 = sphi 0, %s42
      %s59 = sphi 0, %s43
      %s65 = sphi 0, %s67
      %s68 = sphi 0, %s65
      %s69 = sphi 0, %s68
      %s85 = sphi 0, %s69
      %s91 = sphi 0, %s93
      %s94 = sphi 0, %s91
      %s95 = sphi 0, %s94
      %s111 = sphi 0, %s95
    $region4: #{tpu_custom_call.1} parent=1 // loop_header_branch
      %18 = sbr.rel (%p16) target = $region8
    $region5: #{tpu_custom_call.1} parent=1 // loop_body
      %s20 = ssub.s32 %s15, 1
      %s21 = ssub.s32 %s15, 2
      %s28 = sadd.s32 1, %s23
      %p29 = scmp.ge.s32.totalorder %s28, 1
      %s30 = scalar_select %p29, 0, %s28
      %s31 = sadd.s32 1, %s22
      %s32 = scalar_select %p29, %s31, %s22
      %p33 = scmp.ge.s32.totalorder %s32, 2
      %s34 = scalar_select %p33, 0, %s32
      %s35 = ssub.s32 %s22, %s34
      %s36 = ssub.s32 %s23, %s30
      %s37 = sor.u32 %s35, %s36
      %p38 = scmp.eq.s32.totalorder %s37, 0
      %s40 = sadd.s32 %s39, 1
      %s41 = scalar_select %p38, %s39, %s40
      %p44 = pneg %p38
      %p45 = scmp.eq.s32.totalorder %s15, 1
      %p46 = por %p44, %p45
      %p47 = scmp.ne.s32.totalorder %s39, %s42
      %p48 = scmp.eq.s32.totalorder %s15, 0
      %p49 = por %p47, %p48
      %p50 = scmp.ne.s32.totalorder %s39, %s42
      %p51 = scmp.eq.s32.totalorder %s20, 1
      %p52 = por %p50, %p51
      %p53 = scmp.ne.s32.totalorder %s42, %s43
      %p54 = scmp.eq.s32.totalorder %s20, 0
      %p55 = por %p53, %p54
      %p56 = scmp.ne.s32.totalorder %s42, %s43
      %p57 = scmp.eq.s32.totalorder %s21, 1
      %p58 = por %p56, %p57
      %p60 = scmp.ne.s32.totalorder %s43, %s59
      %p61 = scmp.eq.s32.totalorder %s21, 0
      %p62 = por %p60, %p61
      %s63 = ssub.s32 %s22, %s34
      %p64 = scmp.eq.s32.totalorder %s63, 0
      %s66 = sadd.s32 %s65, 1
      %s67 = scalar_select %p64, %s65, %s66
      %p70 = pneg %p64
      %p71 = scmp.eq.s32.totalorder %s15, 1
      %p72 = por %p70, %p71
      %p73 = scmp.ne.s32.totalorder %s65, %s68
      %p74 = scmp.eq.s32.totalorder %s15, 0
      %p75 = por %p73, %p74
      %p76 = scmp.ne.s32.totalorder %s65, %s68
      %p77 = scmp.eq.s32.totalorder %s20, 1
      %p78 = por %p76, %p77
      %p79 = scmp.ne.s32.totalorder %s68, %s69
      %p80 = scmp.eq.s32.totalorder %s20, 0
      %p81 = por %p79, %p80
      %p82 = scmp.ne.s32.totalorder %s68, %s69
      %p83 = scmp.eq.s32.totalorder %s21, 1
      %p84 = por %p82, %p83
      %p86 = scmp.ne.s32.totalorder %s69, %s85
      %p87 = scmp.eq.s32.totalorder %s21, 0
      %p88 = por %p86, %p87
      %s89 = ssub.s32 %s22, %s34
      %p90 = scmp.eq.s32.totalorder %s89, 0
      %s92 = sadd.s32 %s91, 1
      %s93 = scalar_select %p90, %s91, %s92
      %p96 = pneg %p90
      %p97 = scmp.eq.s32.totalorder %s15, 1
      %p98 = por %p96, %p97
      %p99 = scmp.ne.s32.totalorder %s91, %s94
      %p100 = scmp.eq.s32.totalorder %s15, 0
      %p101 = por %p99, %p100
      %p102 = scmp.ne.s32.totalorder %s91, %s94
      %p103 = scmp.eq.s32.totalorder %s20, 1
      %p104 = por %p102, %p103
      %p105 = scmp.ne.s32.totalorder %s94, %s95
      %p106 = scmp.eq.s32.totalorder %s20, 0
      %p107 = por %p105, %p106
      %p108 = scmp.ne.s32.totalorder %s94, %s95
      %p109 = scmp.eq.s32.totalorder %s21, 1
      %p110 = por %p108, %p109
      %p112 = scmp.ne.s32.totalorder %s95, %s111
      %p113 = scmp.eq.s32.totalorder %s21, 0
      %p114 = por %p112, %p113
      %p115 = scmp.le.s32.totalorder 1, %s15
      %p116 = scmp.lt.s32.totalorder %s15, 3
      %p117 = pnand %p115, %p116
      %p118 = pneg %p117
      // Predicated region
      $region9: #{tpu_custom_call.1} parent=5 // pred_check
        _
      $region10: #{tpu_custom_call.1} parent=5 // pred_check_branch
        %120 = sbr.rel (%p117) target = $region12
      $region11: #{tpu_custom_call.1} parent=5 // pred_region
        %s121 = ssub.s32 %s15, 1
      $region12: #{tpu_custom_call.1} parent=5 // pred_fallthru
        _
      %p122 = scmp.lt.s32.totalorder %s15, 2
      // Predicated region
      $region13: #{tpu_custom_call.1} parent=5 // pred_check
        %p123 = pneg %p122
      $region14: #{tpu_custom_call.1} parent=5 // pred_check_branch
        %125 = sbr.rel (%p123) target = $region16
      $region15: #{tpu_custom_call.1} parent=5 // pred_region
        // Predicated region
        $region17: #{tpu_custom_call.1} parent=15 // pred_check
          %p126 = pneg %p49
        $region18: #{tpu_custom_call.1} parent=15 // pred_check_branch
          %128 = sbr.rel (%p126) target = $region20
        $region19: #{tpu_custom_call.1} parent=15 // pred_region
          %s129 = sand.u32 %s39, 1
          %s130 = scalar_lea.sflag [#allocation3], %s129
          %s131 = sand.u32 %s39, 1
          %s132 = smul.addr %s131, 16
          %s133 = scalar_lea.vmem [#allocation2], %s132
          %s134 = smul.u32 2, %s23
          %s136 = ssub.s32 256, 256
          %137 = vsyncadd %s130, %s136
          %s138 = smul.addr %s22, 2
          %s139 = sadd.s32 %s134, %s138
          %s140 = smul.addr %s139, 128
          %s141 = scalar_lea.hbm %s0, %s140
          %s143 = sshll.u32 %s133, 4
          %s144 = int_to_ptr.vmem [resolvable:$true] %s143
          %146 = dma.hbm_to_vmem [thread:$0]  %s141, 256, %s144, %s130
        $region20: #{tpu_custom_call.1} parent=15 // pred_fallthru
          _
      $region16: #{tpu_custom_call.1} parent=5 // pred_fallthru
        _
      %p147 = scmp.le.s32.totalorder 1, %s15
      %p148 = scmp.lt.s32.totalorder %s15, 3
      %p149 = pnand %p147, %p148
      %p150 = pneg %p149
      // Predicated region
      $region21: #{tpu_custom_call.1} parent=5 // pred_check
        _
      $region22: #{tpu_custom_call.1} parent=5 // pred_check_branch
        %152 = sbr.rel (%p149) target = $region24
      $region23: #{tpu_custom_call.1} parent=5 // pred_region
        %s153 = ssub.s32 %s15, 1
        %s154 = sand.u32 %s42, 1
        %s155 = scalar_lea.sflag [#allocation3], %s154
        %s156 = sand.u32 %s42, 1
        %s157 = smul.addr %s156, 16
        %s158 = scalar_lea.vmem [#allocation2], %s157
        // Predicated region
        $region25: #{tpu_custom_call.1} parent=23 // pred_check
          %p159 = pneg %p55
        $region26: #{tpu_custom_call.1} parent=23 // pred_check_branch
          %161 = sbr.rel (%p159) target = $region28
        $region27: #{tpu_custom_call.1} parent=23 // pred_region
          %162 = dma.done %s155, 256
        $region28: #{tpu_custom_call.1} parent=23 // pred_fallthru
          _
        %s163 = sand.u32 %s42, 1
        %s164 = scalar_lea.sflag [#allocation3], %s163
        %s165 = sand.u32 %s42, 1
        %s166 = smul.addr %s165, 16
        %s167 = scalar_lea.vmem [#allocation2], %s166
        %p168 = pneg %p55
        %p169 = pneg %p52
        %p170 = pneg %p81
        %p171 = pneg %p78
        %p172 = scmp.lt.s32.totalorder %s24, 1
        %s173 = scalar_select %p172, %s24, 1
        %s174 = smul.addr %s173, 8
        %s175 = scalar_lea.vmem %s1, %s174
        %p176 = pneg %p107
        %p177 = pneg %p104
        %s178 = sand.u32 %s94, 1
        %s179 = scalar_lea.sflag [#allocation4], %s178
        %s180 = sand.u32 %s94, 1
        %s181 = smul.addr %s180, 8
        %s182 = scalar_lea.vmem [#allocation5], %s181
        %s183 = smul.u32 2, %s25
        %p184 = scmp.lt.s32.totalorder %s24, 1
        %s185 = scalar_select %p184, %s24, 1
        %s186 = smul.addr %s185, 8
        %s187 = scalar_lea.vmem %s1, %s186
        %p188 = scmp.eq.s32.totalorder %s25, 0
        // Predicated region
        $region29: #{tpu_custom_call.1} parent=23 // pred_check
          %p189 = pneg %p188
        $region30: #{tpu_custom_call.1} parent=23 // pred_check_branch
          %191 = sbr.rel (%p189) target = $region32
        $region31: #{tpu_custom_call.1} parent=23 // pred_region
          %vm192 = vcmask 7168
          %193 = vst.msk [vmem:[%s187] sm:$0xff] %vm192, 0.0
          %vm194 = vcmask 64512
          %195 = vst.msk [vmem:[%s182] sm:$0xff] %vm194, 0.0
        $region32: #{tpu_custom_call.1} parent=23 // pred_fallthru
          _
        %v196 = vld [vmem:[%s158] sm:$0xff]
        %v197 = vld [vmem:[%s158 + $0x8] sm:$0xff]
        %v198 = vld [vmem:[%s187] sm:$0xff]
        %199 = vmatprep.subr.mxu0 0.0
        %200 = vmatpush1.msra.mxu0 1.0
        %201 = vmatprep.subr.mxu0 0.0
        %202 = vmatpush1.msra.mxu0 1.0
        %203 = vmatprep.subr.mxu0 0.0
        %204 = vmatpush1.msra.mxu0 1.0
        %205 = vmatprep.subr.mxu0 0.0
        %206 = vmatpush1.msra.mxu0 1.0
        %207 = vmatprep.subr.mxu0 0.0
        %208 = vmatpush1.msra.mxu0 1.0
        %209 = vmatprep.subr.mxu0 0.0
        %210 = vmatpush1.msra.mxu0 1.0
        %211 = vmatprep.subr.mxu0 0.0
        %212 = vmatpush1.msra.mxu0 1.0
        %213 = vmatprep.subr.mxu0 0.0
        %214 = vmatpush1.msra.mxu0 1.0
        %215 = vmatprep.subr.mxu0 0.0
        %216 = vmatpush1.msra.mxu0 1.0
        %217 = vmatprep.subr.mxu0 0.0
        %218 = vmatpush1.msra.mxu0 1.0
        %219 = vmatprep.subr.mxu0 0.0
        %220 = vmatpush1.msra.mxu0 1.0
        %221 = vmatprep.subr.mxu0 0.0
        %222 = vmatpush1.msra.mxu0 1.0
        %223 = vmatprep.subr.mxu0 0.0
        %224 = vmatpush1.msra.mxu0 1.0
        %225 = vmatprep.subr.mxu0 0.0
        %226 = vmatpush1.msra.mxu0 1.0
        %227 = vmatprep.subr.mxu0 0.0
        %228 = vmatpush1.msra.mxu0 1.0
        %229 = vmatprep.subr.mxu0 0.0
        %230 = vmatpush1.msra.mxu0 1.0
        %231 = vmatprep.subr.mxu0 0.0
        %232 = vmatpush1.msra.mxu0 1.0
        %233 = vmatprep.subr.mxu0 0.0
        %234 = vmatpush1.msra.mxu0 1.0
        %235 = vmatprep.subr.mxu0 0.0
        %236 = vmatpush1.msra.mxu0 1.0
        %237 = vmatprep.subr.mxu0 0.0
        %238 = vmatpush1.msra.mxu0 1.0
        %239 = vmatprep.subr.mxu0 0.0
        %240 = vmatpush1.msra.mxu0 1.0
        %241 = vmatprep.subr.mxu0 0.0
        %242 = vmatpush1.msra.mxu0 1.0
        %243 = vmatprep.subr.mxu0 0.0
        %244 = vmatpush1.msra.mxu0 1.0
        %245 = vmatprep.subr.mxu0 0.0
        %246 = vmatpush1.msra.mxu0 1.0
        %247 = vmatprep.subr.mxu0 0.0
        %248 = vmatpush1.msra.mxu0 1.0
        %249 = vmatprep.subr.mxu0 0.0
        %250 = vmatpush1.msra.mxu0 1.0
        %251 = vmatprep.subr.mxu0 0.0
        %252 = vmatpush1.msra.mxu0 1.0
        %253 = vmatprep.subr.mxu0 0.0
        %254 = vmatpush1.msra.mxu0 1.0
        %255 = vmatprep.subr.mxu0 0.0
        %256 = vmatpush1.msra.mxu0 1.0
        %257 = vmatprep.subr.mxu0 0.0
        %258 = vmatpush1.msra.mxu0 1.0
        %259 = vmatprep.subr.mxu0 0.0
        %260 = vmatpush1.msra.mxu0 1.0
        %261 = vmatprep.subr.mxu0 0.0
        %262 = vmatpush1.msra.mxu0 1.0
        %263 = vmatprep.mubr.f32.mxu0 %v197
        %264 = vmatmul.mubr.f32.gmra.mrb[0].mxu0 %v196
        %v265 = vpop.f32.mrb[0].mxu0
        %v266 = vadd.f32 0.0, %v265
        %v267 = vpop.f32.mrb[0].mxu0
        %268 = vdwg.mxu0
        %v269 = vadd.f32 %v198, %v266
        %vm270 = vcmask 7168
        %271 = vst.msk [vmem:[%s187] sm:$0xff] %vm270, %v269
        %v272 = vld [vmem:[%s182] sm:$0xff]
        %273 = vmatprep.subr.mxu0 %v197
        %274 = vmatpush1.xpose.msra.mxu0 %v196
        %275 = vmatprep.subr.mxu0 0.0
        %276 = vmatpush1.xpose.msra.mxu0 0.0
        %277 = vmatprep.subr.mxu0 0.0
        %278 = vmatpush1.xpose.msra.mxu0 0.0
        %279 = vmatprep.subr.mxu0 0.0
        %280 = vmatpush1.xpose.msra.mxu0 0.0
        %281 = vmatprep.subr.mxu0 0.0
        %282 = vmatpush1.xpose.msra.mxu0 0.0
        %283 = vmatprep.subr.mxu0 0.0
        %284 = vmatpush1.xpose.msra.mxu0 0.0
        %285 = vmatprep.subr.mxu0 0.0
        %286 = vmatpush1.xpose.msra.mxu0 0.0
        %287 = vmatprep.subr.mxu0 0.0
        %288 = vmatpush1.xpose.msra.mxu0 0.0
        %289 = vmatprep.subr.mxu0 0.0
        %290 = vmatpush1.xpose.msra.mxu0 0.0
        %291 = vmatprep.subr.mxu0 0.0
        %292 = vmatpush1.xpose.msra.mxu0 0.0
        %293 = vmatprep.subr.mxu0 0.0
        %294 = vmatpush1.xpose.msra.mxu0 0.0
        %295 = vmatprep.subr.mxu0 0.0
        %296 = vmatpush1.xpose.msra.mxu0 0.0
        %297 = vmatprep.subr.mxu0 0.0
        %298 = vmatpush1.xpose.msra.mxu0 0.0
        %299 = vmatprep.subr.mxu0 0.0
        %300 = vmatpush1.xpose.msra.mxu0 0.0
        %301 = vmatprep.subr.mxu0 0.0
        %302 = vmatpush1.xpose.msra.mxu0 0.0
        %303 = vmatprep.subr.mxu0 0.0
        %304 = vmatpush1.xpose.msra.mxu0 0.0
        %305 = vmatprep.subr.mxu0 0.0
        %306 = vmatpush1.xpose.msra.mxu0 0.0
        %307 = vmatprep.subr.mxu0 0.0
        %308 = vmatpush1.xpose.msra.mxu0 0.0
        %309 = vmatprep.subr.mxu0 0.0
        %310 = vmatpush1.xpose.msra.mxu0 0.0
        %311 = vmatprep.subr.mxu0 0.0
        %312 = vmatpush1.xpose.msra.mxu0 0.0
        %313 = vmatprep.subr.mxu0 0.0
        %314 = vmatpush1.xpose.msra.mxu0 0.0
        %315 = vmatprep.subr.mxu0 0.0
        %316 = vmatpush1.xpose.msra.mxu0 0.0
        %317 = vmatprep.subr.mxu0 0.0
        %318 = vmatpush1.xpose.msra.mxu0 0.0
        %319 = vmatprep.subr.mxu0 0.0
        %320 = vmatpush1.xpose.msra.mxu0 0.0
        %321 = vmatprep.subr.mxu0 0.0
        %322 = vmatpush1.xpose.msra.mxu0 0.0
        %323 = vmatprep.subr.mxu0 0.0
        %324 = vmatpush1.xpose.msra.mxu0 0.0
        %325 = vmatprep.subr.mxu0 0.0
        %326 = vmatpush1.xpose.msra.mxu0 0.0
        %327 = vmatprep.subr.mxu0 0.0
        %328 = vmatpush1.xpose.msra.mxu0 0.0
        %329 = vmatprep.subr.mxu0 0.0
        %330 = vmatpush1.xpose.msra.mxu0 0.0
        %331 = vmatprep.subr.mxu0 0.0
        %332 = vmatpush1.xpose.msra.mxu0 0.0
        %333 = vmatprep.subr.mxu0 0.0
        %334 = vmatpush1.xpose.msra.mxu0 0.0
        %335 = vmatprep.subr.mxu0 0.0
        %336 = vmatpush1.xpose.msra.mxu0 0.0
        %337 = vmatprep.mubr.f32.mxu0 %v197
        %338 = vmatmul.mubr.f32.gmra.mrb[0].mxu0 %v196
        %v339 = vpop.f32.mrb[0].mxu0
        %v340 = vadd.f32 0.0, %v339
        %v341 = vpop.f32.mrb[0].mxu0
        %342 = vdwg.mxu0
        %v343 = vadd.f32 %v272, %v340
        %vm344 = vcmask 64512
        %345 = vst.msk [vmem:[%s182] sm:$0xff] %vm344, %v343
        %p346 = scmp.lt.s32.totalorder %s24, 1
        %s347 = scalar_select %p346, %s24, 1
        %s348 = smul.addr %s347, 8
        %s349 = scalar_lea.vmem %s1, %s348
        %s350 = sand.u32 %s94, 1
        %s351 = scalar_lea.sflag [#allocation4], %s350
        %s352 = sand.u32 %s94, 1
        %s353 = smul.addr %s352, 8
        %s354 = scalar_lea.vmem [#allocation5], %s353
        // Predicated region
        $region33: #{tpu_custom_call.1} parent=23 // pred_check
          %p355 = pneg %p78
        $region34: #{tpu_custom_call.1} parent=23 // pred_check_branch
          %357 = sbr.rel (%p355) target = $region36
        $region35: #{tpu_custom_call.1} parent=23 // pred_region
          _
        $region36: #{tpu_custom_call.1} parent=23 // pred_fallthru
          _
        // Predicated region
        $region37: #{tpu_custom_call.1} parent=23 // pred_check
          %p358 = pneg %p104
        $region38: #{tpu_custom_call.1} parent=23 // pred_check_branch
          %360 = sbr.rel (%p358) target = $region40
        $region39: #{tpu_custom_call.1} parent=23 // pred_region
          %s362 = ssub.s32 128, 128
          %363 = vsyncadd %s351, %s362
          %s364 = smul.addr %s24, 128
          %s365 = scalar_lea.hbm %s2, %s364
          %s367 = sshll.u32 %s354, 4
          %s368 = int_to_ptr.vmem [resolvable:$true] %s367
          %370 = dma.vmem_to_hbm [thread:$0]  %s368, 128, %s365, %s351
        $region40: #{tpu_custom_call.1} parent=23 // pred_fallthru
          _
      $region24: #{tpu_custom_call.1} parent=5 // pred_fallthru
        _
      %p371 = scmp.le.s32.totalorder 2, %s15
      // Predicated region
      $region41: #{tpu_custom_call.1} parent=5 // pred_check
        %p372 = pneg %p371
      $region42: #{tpu_custom_call.1} parent=5 // pred_check_branch
        %374 = sbr.rel (%p372) target = $region44
      $region43: #{tpu_custom_call.1} parent=5 // pred_region
        %s375 = ssub.s32 %s15, 2
        // Predicated region
        $region45: #{tpu_custom_call.1} parent=43 // pred_check
          %p376 = pneg %p84
        $region46: #{tpu_custom_call.1} parent=43 // pred_check_branch
          %378 = sbr.rel (%p376) target = $region48
        $region47: #{tpu_custom_call.1} parent=43 // pred_region
          %p379 = scmp.lt.s32.totalorder %s26, 1
          %s380 = scalar_select %p379, %s26, 1
          %s381 = smul.addr %s380, 8
          %s382 = scalar_lea.vmem %s1, %s381
        $region48: #{tpu_custom_call.1} parent=43 // pred_fallthru
          _
        // Predicated region
        $region49: #{tpu_custom_call.1} parent=43 // pred_check
          %p383 = pneg %p110
        $region50: #{tpu_custom_call.1} parent=43 // pred_check_branch
          %385 = sbr.rel (%p383) target = $region52
        $region51: #{tpu_custom_call.1} parent=43 // pred_region
          %s386 = sand.u32 %s95, 1
          %s387 = scalar_lea.sflag [#allocation4], %s386
          %s388 = sand.u32 %s95, 1
          %s389 = smul.addr %s388, 8
          %s390 = scalar_lea.vmem [#allocation5], %s389
          %391 = dma.done %s387, 128
        $region52: #{tpu_custom_call.1} parent=43 // pred_fallthru
          _
      $region44: #{tpu_custom_call.1} parent=5 // pred_fallthru
        _
    $region6: #{tpu_custom_call.1} parent=1 // loop_footer
      %s19 = sadd.s32 1, %s15
    $region7: #{tpu_custom_call.1} parent=1 // loop_footer_branch
      %14 = sbr.rel target = $region3
    $region8: #{tpu_custom_call.1} parent=1 // loop_exit
      _
    %392 = vsyncpa [#allocation3], 1
    %s393 = scalar_lea.sflag [#allocation3], 1
    %394 = vsyncpa %s393, 1
    %395 = vsyncpa [#allocation4], 1
    %s396 = scalar_lea.sflag [#allocation4], 1
    %397 = vsyncpa %s396, 1

</llo_original>
